<compile_context>
chip_gen: v7x
topology: tpu7x:2x2x1
jax: 0.10.0
libtpu: 0.0.40
codegen_flags: <defaults>
</compile_context>

<pallas_src>
import math

import jax
import jax.numpy as jnp
from jax.experimental import pallas as pl
from jax.experimental.pallas import tpu as pltpu


def logreg_kernel(x_ref, w_ref, b_ref, o_ref):
    # Full-K matmul on the MXU with f32 accumulation; bias add on the VPU.
    acc = jnp.dot(x_ref[...], w_ref[...], preferred_element_type=jnp.float32)
    o_ref[...] = (acc + b_ref[...]).astype(o_ref.dtype)


def _round_up(v, m):
    return ((v + m - 1) // m) * m


def _vmem_tile_bytes(rows, cols, itemsize):
    # VMEM buffers are laid out on (8, 128) tiles: last dim pads to 128 lanes,
    # second-to-last to 8 sublanes.
    return _round_up(max(rows, 1), 8) * _round_up(max(cols, 1), 128) * itemsize


def logreg_forward(
    x,
    w_t,
    b,
    *,
    max_tile_n=2048,
    min_grid_steps=2,
    vmem_budget_bytes=48 * 1024 * 1024,
    compute_dtype=None,
):
    """x: (N, ft_in), w_t: (ft_in, nb_classes), b: (nb_classes,) or (1, nb_classes).

    Returns (N, nb_classes), matching nn.Linear(ft_in, nb_classes)(x).
    """
    n, ft_in = x.shape
    nb_classes = w_t.shape[1]
    out_dtype = x.dtype  # captured BEFORE any compute_dtype cast

    if compute_dtype is not None:
        # Halves HBM read traffic for X/W; accumulation stays f32 on the MXU.
        x = x.astype(compute_dtype)
        w_t = w_t.astype(compute_dtype)

    b2 = b.reshape(1, nb_classes).astype(jnp.float32)

    x_item = jnp.dtype(x.dtype).itemsize
    w_item = jnp.dtype(w_t.dtype).itemsize
    o_item = jnp.dtype(out_dtype).itemsize

    # ---- row tile selection (no host padding; ragged last block is handled) ----
    num_steps = pl.cdiv(n, max_tile_n)
    tile_n = _round_up(pl.cdiv(n, num_steps), 8)  # balanced, sublane-aligned tiles
    if n >= min_grid_steps * 512:
        # Keep at least `min_grid_steps` row blocks so v7x's two TensorCores
        # both get work (neutral on single-TC v5e/v6e).
        tile_n = min(tile_n, _round_up(pl.cdiv(n, min_grid_steps), 8))

    def _est_vmem(t):
        # double-buffered X / out tiles + (double-buffered) resident W / b
        return 2 * (
            _vmem_tile_bytes(t, ft_in, x_item)
            + _vmem_tile_bytes(t, nb_classes, o_item)
            + _vmem_tile_bytes(ft_in, nb_classes, w_item)
            + _vmem_tile_bytes(1, nb_classes, 4)
        )

    while tile_n > 8 and _est_vmem(tile_n) > int(0.8 * vmem_budget_bytes):
        tile_n = max(8, _round_up(tile_n // 2, 8))
    if tile_n >= n:
        # Single full-dim block (legal even if n is not a multiple of 8).
        tile_n = n

    grid = (pl.cdiv(n, tile_n),)

    cost = pl.CostEstimate(
        flops=2 * n * ft_in * nb_classes,
        transcendentals=0,
        bytes_accessed=(
            n * ft_in * x_item
            + ft_in * nb_classes * w_item
            + nb_classes * 4
            + n * nb_classes * o_item
        ),
    )

    out = pl.pallas_call(
        logreg_kernel,
        out_shape=jax.ShapeDtypeStruct((n, nb_classes), out_dtype),
        grid_spec=pltpu.PrefetchScalarGridSpec(
            num_scalar_prefetch=0,
            grid=grid,
            in_specs=[
                # One row tile of X per grid step; K is a full-dim block (no pad).
                pl.BlockSpec((tile_n, ft_in), lambda i: (i, 0)),
                # Full weight / bias resident every step (full-dim blocks, no pad).
                pl.BlockSpec((ft_in, nb_classes), lambda i: (0, 0)),
                pl.BlockSpec((1, nb_classes), lambda i: (0, 0)),
            ],
            # Output writes exactly nb_classes lanes — no padded slab, no slice pass.
            out_specs=pl.BlockSpec((tile_n, nb_classes), lambda i: (i, 0)),
        ),
        compiler_params=pltpu.CompilerParams(
            dimension_semantics=("parallel",),
            vmem_limit_bytes=int(vmem_budget_bytes),
        ),
        cost_estimate=cost,
    )(x, w_t, b2)

    return out


def init_logreg_params(key, ft_in, nb_classes, dtype=jnp.float32):
    """Deterministic xavier_uniform_ weight + zero bias, matching LogReg.__init__."""
    # PyTorch nn.Linear weight is (nb_classes, ft_in); xavier bound uses fan_in+fan_out.
    bound = math.sqrt(6.0 / (ft_in + nb_classes))
    w = jax.random.uniform(
        key, (nb_classes, ft_in), dtype=dtype, minval=-bound, maxval=bound
    )
    b = jnp.zeros((nb_classes,), dtype=dtype)
    # Pre-transposed for the kernel layout: (ft_in, nb_classes).
    return w.T, b


if __name__ == "__main__":
    ft_in = 32
    nb_classes = 7
    n = 16  # number of rows in `seq`

    key = jax.random.PRNGKey(0)
    k_x, k_w = jax.random.split(key)

    x = jax.random.normal(k_x, (n, ft_in), dtype=jnp.float32)
    w_t, b = init_logreg_params(k_w, ft_in, nb_classes)

    out = logreg_forward(x, w_t, b)
    out = jax.block_until_ready(out)

    # Sanity check against plain JAX reference (same math as nn.Linear).
    ref = x @ w_t + b.reshape(1, -1)
    assert out.shape == (n, nb_classes)
    assert jnp.allclose(out, ref, atol=1e-5, rtol=1e-5)

    print("KERNEL_OK")
</pallas_src>

<mosaic_0001>
module attributes {stable_mosaic.version = 11 : i64} {
  func.func @logreg_kernel(%arg0: i32, %arg1: memref<16x32xf32, #tpu.memory_space<vmem>>, %arg2: memref<32x7xf32, #tpu.memory_space<vmem>>, %arg3: memref<1x7xf32, #tpu.memory_space<vmem>>, %arg4: memref<16x7xf32, #tpu.memory_space<vmem>>) attributes {dimension_semantics = [#tpu.dimension_semantics<parallel>], iteration_bounds = array<i64: 1>, scalar_prefetch = 0 : i64, scratch_operands = 0 : i64, tpu.core_type = #tpu.core_type<tc>, window_params = [{transform_indices = @transform_0, window_bounds = array<i64: 16, 32>}, {pipeline_mode = #tpu.pipeline_mode<synchronous>, transform_indices = @transform_1, window_bounds = array<i64: 32, 7>}, {pipeline_mode = #tpu.pipeline_mode<synchronous>, transform_indices = @transform_2, window_bounds = array<i64: 1, 7>}, {transform_indices = @transform_3, window_bounds = array<i64: 16, 7>}]} {
    %c0 = arith.constant 0 : index
    %c0_0 = arith.constant 0 : index
    %0 = vector.load %arg1[%c0, %c0_0] : memref<16x32xf32, #tpu.memory_space<vmem>>, vector<16x32xf32>
    %c0_1 = arith.constant 0 : index
    %c0_2 = arith.constant 0 : index
    %1 = vector.load %arg2[%c0_1, %c0_2] : memref<32x7xf32, #tpu.memory_space<vmem>>, vector<32x7xf32>
    %cst = arith.constant dense<0.000000e+00> : vector<16x7xf32>
    %2 = tpu.matmul %0, %1, %cst {dimension_numbers = #tpu.dot_dimension_numbers<[1], [0], [0], [1], [0, 0, 1, 1], [], []>} : vector<16x32xf32>, vector<32x7xf32>, vector<16x7xf32> -> vector<16x7xf32>
    %c0_3 = arith.constant 0 : index
    %c0_4 = arith.constant 0 : index
    %3 = vector.load %arg3[%c0_3, %c0_4] : memref<1x7xf32, #tpu.memory_space<vmem>>, vector<1x7xf32>
    %4 = vector.broadcast %3 : vector<1x7xf32> to vector<16x7xf32>
    %5 = arith.addf %2, %4 : vector<16x7xf32>
    %c0_5 = arith.constant 0 : index
    %c0_6 = arith.constant 0 : index
    %6 = vector.load %arg4[%c0_5, %c0_6] : memref<16x7xf32, #tpu.memory_space<vmem>>, vector<16x7xf32>
    tpu.vector_store %arg4[%c0_5, %c0_6], %5 {strides = array<i32>} : memref<16x7xf32, #tpu.memory_space<vmem>>, vector<16x7xf32>,
    return
  }
  func.func @transform_0(%arg0: i32) -> (i32, i32) {
    %c0_i32 = arith.constant 0 : i32
    %c0_i32_0 = arith.constant 0 : i32
    return %arg0, %c0_i32 : i32, i32
  }
  func.func @transform_1(%arg0: i32) -> (i32, i32) {
    %c0_i32 = arith.constant 0 : i32
    %c0_i32_0 = arith.constant 0 : i32
    %c0_i32_1 = arith.constant 0 : i32
    return %c0_i32, %c0_i32_0 : i32, i32
  }
  func.func @transform_2(%arg0: i32) -> (i32, i32) {
    %c0_i32 = arith.constant 0 : i32
    %c0_i32_0 = arith.constant 0 : i32
    %c0_i32_1 = arith.constant 0 : i32
    return %c0_i32, %c0_i32_0 : i32, i32
  }
  func.func @transform_3(%arg0: i32) -> (i32, i32) {
    %c0_i32 = arith.constant 0 : i32
    %c0_i32_0 = arith.constant 0 : i32
    return %arg0, %c0_i32 : i32, i32
  }
}

</mosaic_0001>

<llo_original>
// kernel: tpu_custom_call.1
$region0: #{tpu_custom_call.1}
  #allocation0 [shape = 'u32[]', space=smem, size = 0x4, offset = 0x4, fixed_abs, tag = 'smem constant byte address 0x4 - core index']
  #allocation1 [shape = 'u32[144,128]{1,0:T(1,128)}', space=vmem, size = 0x12000, scoped, tag = 'internal scratch']
  %s0 = inlined_call_operand.vmem [shape: f32[16,32], index: 0, kind: input, shape index: {}]
  %s1 = inlined_call_operand.vmem [shape: f32[32,7], index: 1, kind: input, shape index: {}]
  %s2 = inlined_call_operand.vmem [shape: f32[1,7], index: 2, kind: input, shape index: {}]
  %s3 = inlined_call_operand.vmem [shape: f32[16,7], index: 3, kind: output, shape index: {}]
  %s4 = sld [smem:[#allocation0]]
  $region22: #{tpu_custom_call.1} parent=0
    _
  %s6 = ssub.s32 1, %s4
  %s7 = scalar_select 0, %s6, %s4
  // Predicated region
  $region2: #{tpu_custom_call.1} parent=0 // pred_check
    _
  $region3: #{tpu_custom_call.1} parent=0 // pred_check_branch
    %9 = sbr.rel (0) target = $region5
  $region4: #{tpu_custom_call.1} parent=0 // pred_region
    _
  $region5: #{tpu_custom_call.1} parent=0 // pred_fallthru
    _
  // Predicated region
  $region6: #{tpu_custom_call.1} parent=0 // pred_check
    _
  $region7: #{tpu_custom_call.1} parent=0 // pred_check_branch
    %11 = sbr.rel (0) target = $region9
  $region8: #{tpu_custom_call.1} parent=0 // pred_region
    _
  $region9: #{tpu_custom_call.1} parent=0 // pred_fallthru
    _
  // Predicated region
  $region10: #{tpu_custom_call.1} parent=0 // pred_check
    _
  $region11: #{tpu_custom_call.1} parent=0 // pred_check_branch
    %13 = sbr.rel (0) target = $region13
  $region12: #{tpu_custom_call.1} parent=0 // pred_region
    _
  $region13: #{tpu_custom_call.1} parent=0 // pred_fallthru
    _
  %v14 = vld [vmem:[%s0] sm:$0xff]
  %v15 = vld [vmem:[%s0 + $0x8] sm:$0xff]
  %v16 = vld [vmem:[%s1] sm:$0xff]
  %v17 = vld [vmem:[%s1 + $0x8] sm:$0xff]
  %v18 = vld [vmem:[%s1 + $0x10] sm:$0xff]
  %v19 = vld [vmem:[%s1 + $0x18] sm:$0xff]
  %v20 = vld [vmem:[%s2] sm:$0x1]
  %v22 = vlaneseq
  %v23 = vshrl.u32 %v22, 7
  %v24 = vsub.s32 0, %v23
  %v25 = vrot.slane %v20, %v24
  %vm27 = vcmask 261120
  %v29 = vsel %vm27, %v14, 0
  %v32 = vsel %vm27, %v15, 0
  %34 = vmatprep.subr.mxu0 0.0
  %35 = vmatpush1.msra.mxu0 %v16
  %36 = vmatprep.subr.mxu0 0.0
  %37 = vmatpush1.msra.mxu0 %v17
  %38 = vmatprep.subr.mxu0 0.0
  %39 = vmatpush1.msra.mxu0 %v18
  %40 = vmatprep.subr.mxu0 0.0
  %41 = vmatpush1.msra.mxu0 %v19
  %42 = vmatprep.subr.mxu0 0.0
  %43 = vmatpush1.msra.mxu0 0.0
  %44 = vmatprep.subr.mxu0 0.0
  %45 = vmatpush1.msra.mxu0 0.0
  %46 = vmatprep.subr.mxu0 0.0
  %47 = vmatpush1.msra.mxu0 0.0
  %48 = vmatprep.subr.mxu0 0.0
  %49 = vmatpush1.msra.mxu0 0.0
  %50 = vmatprep.subr.mxu0 0.0
  %51 = vmatpush1.msra.mxu0 0.0
  %52 = vmatprep.subr.mxu0 0.0
  %53 = vmatpush1.msra.mxu0 0.0
  %54 = vmatprep.subr.mxu0 0.0
  %55 = vmatpush1.msra.mxu0 0.0
  %56 = vmatprep.subr.mxu0 0.0
  %57 = vmatpush1.msra.mxu0 0.0
  %58 = vmatprep.subr.mxu0 0.0
  %59 = vmatpush1.msra.mxu0 0.0
  %60 = vmatprep.subr.mxu0 0.0
  %61 = vmatpush1.msra.mxu0 0.0
  %62 = vmatprep.subr.mxu0 0.0
  %63 = vmatpush1.msra.mxu0 0.0
  %64 = vmatprep.subr.mxu0 0.0
  %65 = vmatpush1.msra.mxu0 0.0
  %66 = vmatprep.subr.mxu0 0.0
  %67 = vmatpush1.msra.mxu0 0.0
  %68 = vmatprep.subr.mxu0 0.0
  %69 = vmatpush1.msra.mxu0 0.0
  %70 = vmatprep.subr.mxu0 0.0
  %71 = vmatpush1.msra.mxu0 0.0
  %72 = vmatprep.subr.mxu0 0.0
  %73 = vmatpush1.msra.mxu0 0.0
  %74 = vmatprep.subr.mxu0 0.0
  %75 = vmatpush1.msra.mxu0 0.0
  %76 = vmatprep.subr.mxu0 0.0
  %77 = vmatpush1.msra.mxu0 0.0
  %78 = vmatprep.subr.mxu0 0.0
  %79 = vmatpush1.msra.mxu0 0.0
  %80 = vmatprep.subr.mxu0 0.0
  %81 = vmatpush1.msra.mxu0 0.0
  %82 = vmatprep.subr.mxu0 0.0
  %83 = vmatpush1.msra.mxu0 0.0
  %84 = vmatprep.subr.mxu0 0.0
  %85 = vmatpush1.msra.mxu0 0.0
  %86 = vmatprep.subr.mxu0 0.0
  %87 = vmatpush1.msra.mxu0 0.0
  %88 = vmatprep.subr.mxu0 0.0
  %89 = vmatpush1.msra.mxu0 0.0
  %90 = vmatprep.subr.mxu0 0.0
  %91 = vmatpush1.msra.mxu0 0.0
  %92 = vmatprep.subr.mxu0 0.0
  %93 = vmatpush1.msra.mxu0 0.0
  %94 = vmatprep.subr.mxu0 0.0
  %95 = vmatpush1.msra.mxu0 0.0
  %96 = vmatprep.subr.mxu0 0.0
  %97 = vmatpush1.msra.mxu0 0.0
  %98 = vmatprep.mubr.f32.mxu0 0.0
  %99 = vmatmul.mubr.f32.gmra.mrb[0].mxu0 %v29
  %v100 = vpop.f32.mrb[0].mxu0
  %v101 = vadd.f32 %v25, %v100
  %v102 = vpop.f32.mrb[0].mxu0
  %103 = vmatprep.mubr.f32.mxu0 0.0
  %104 = vmatmul.mubr.f32.gmra.mrb[0].mxu0 %v32
  %v105 = vpop.f32.mrb[0].mxu0
  %v106 = vadd.f32 %v25, %v105
  %v107 = vpop.f32.mrb[0].mxu0
  %108 = vdwg.mxu0
  %vm109 = vcmask 56320
  %110 = vst.msk [vmem:[%s3] sm:$0xff] %vm109, %v101
  %111 = vst.msk [vmem:[%s3 + $0x8] sm:$0xff] %vm109, %v106
  // Predicated region
  $region14: #{tpu_custom_call.1} parent=0 // pred_check
    _
  $region15: #{tpu_custom_call.1} parent=0 // pred_check_branch
    %113 = sbr.rel (0) target = $region17
  $region16: #{tpu_custom_call.1} parent=0 // pred_region
    _
  $region17: #{tpu_custom_call.1} parent=0 // pred_fallthru
    _
  // Predicated region
  $region18: #{tpu_custom_call.1} parent=0 // pred_check
    _
  $region19: #{tpu_custom_call.1} parent=0 // pred_check_branch
    %115 = sbr.rel (0) target = $region21
  $region20: #{tpu_custom_call.1} parent=0 // pred_region
    _
  $region21: #{tpu_custom_call.1} parent=0 // pred_fallthru
    _

</llo_original>
